<compile_context>
chip_gen: v7x
topology: tpu7x:2x2x1
jax: 0.10.0
libtpu: 0.0.40
codegen_flags: <defaults>
</compile_context>

<pallas_src>
import functools

import jax
import jax.numpy as jnp
from jax import lax
from jax.experimental import pallas as pl
from jax.experimental.pallas import tpu as pltpu

GAMMA = 2.0              # module default; kernel exploits gamma == 2
_LANE = 128              # lane width (last-dim of the streamed slab)
_MAX_BLOCK_ROWS = 8192   # 8192 x 128 x 4B = 4 MiB per f32 input block


def _round_up(v, m):
    return ((v + m - 1) // m) * m


def _cdiv(a, b):
    return (a + b - 1) // b


def _focal_loss_kernel(x_ref, t_ref, o_ref, *, block_rows, lanes, out_rows,
                       full_rows, tail_cols, apply_mask, binary_targets):
    x = x_ref[...].astype(jnp.float32)
    t = t_ref[...].astype(jnp.float32)

    # Shared softplus tail: L = log1p(exp(-|x|))
    L = jnp.log1p(jnp.exp(-jnp.abs(x)))
    # Stable BCE-with-logits: x*(1-t) + max(-x,0) + L
    bce = x * (1.0 - t) + jnp.maximum(-x, 0.0) + L

    s2t = t * 2.0 - 1.0                    # +1 for t==1, -1 for t==0
    if binary_targets:
        # Hard {0,1} targets: |z| == |x| with z = -x*s2t, so
        # focal = exp(2*logsigmoid(z)) = exp(-2*(max(-z,0) + L)).
        focal = jnp.exp(-2.0 * (jnp.maximum(x * s2t, 0.0) + L))
    else:
        # Soft targets: |z|-stable sigmoid, reciprocal on the EUP + one NR step.
        z = -x * s2t
        ez = jnp.exp(-jnp.abs(z))
        denom = 1.0 + ez
        inv = pl.reciprocal(denom, approx=True)
        inv = inv * (2.0 - denom * inv)             # Newton-Raphson refinement
        s = jnp.where(z >= 0.0, inv, ez * inv)      # sigmoid(z)
        focal = s * s
    loss = focal * bce

    def partial_sum(v):
        if out_rows == block_rows:
            return v
        # Stop the reduction at sublane granularity: (block_rows,L) -> (8,L).
        return jnp.sum(v.reshape(block_rows // 8, 8, lanes), axis=0)

    if apply_mask:
        i = pl.program_id(0)
        last = pl.num_programs(0) - 1

        @pl.when(i < last)
        def _():
            o_ref[...] = partial_sum(loss)

        @pl.when(i == last)
        def _():
            # Only the last block pays for the mask (padded lane tail and/or
            # ragged block rows).  Must be a select, not a multiply: the
            # out-of-bounds block contents are unspecified (may be Inf/NaN).
            row = i * block_rows + lax.broadcasted_iota(jnp.int32, loss.shape, 0)
            valid = row < full_rows
            if tail_cols:
                col = lax.broadcasted_iota(jnp.int32, loss.shape, 1)
                valid = valid | ((row == full_rows) & (col < tail_cols))
            o_ref[...] = partial_sum(jnp.where(valid, loss, 0.0))
    else:
        o_ref[...] = partial_sum(loss)


@functools.partial(jax.jit, static_argnames=("binary_targets",))
def focal_loss(x, target, *, binary_targets=None):
    """Focal loss (gamma=2) matching PyTorch FocalLoss.forward semantics.

    `target` may stay in its narrowest upstream dtype (bool / int8 / bf16 /
    f32); the kernel casts after the DMA.  `binary_targets=True` selects a
    cheaper compute path valid only for hard {0, 1} targets (auto-enabled for
    integer/bool target dtypes).
    """
    if binary_targets is None:
        binary_targets = bool(
            jnp.issubdtype(target.dtype, jnp.integer) or target.dtype == jnp.bool_)

    total = x.size
    # PyTorch: 2-D elementwise loss -> sum(dim=1).mean(); else plain mean.
    denom = x.shape[0] if x.ndim == 2 else total

    x_flat = x.reshape(-1)
    t_flat = target.reshape(-1)            # native dtype; kernel casts post-DMA

    full_rows, tail_cols = divmod(total, _LANE)
    rows = full_rows + (1 if tail_cols else 0)
    pad = rows * _LANE - total             # < _LANE; only the lane tail
    if pad:
        # TODO(synk): this is still one extra read+write of x/target; killing
        # it entirely needs a manual (pl.ANY) DMA path for the ragged tail.
        x_flat = jnp.pad(x_flat, (0, pad))
        t_flat = jnp.pad(t_flat, (0, pad))
    x2 = x_flat.reshape(rows, _LANE)
    t2 = t_flat.reshape(rows, _LANE)

    # Block rows: multiple of 8 and <= rows (or the full extent for tiny rows).
    if rows <= 8:
        block_rows = rows
    else:
        block_rows = min(_MAX_BLOCK_ROWS, (rows // 8) * 8)
    num_blocks = _cdiv(rows, block_rows)
    if num_blocks == 1 and rows >= 64:
        # Split into >= 2 blocks so v7x's two TensorCores both get work.
        block_rows = min(block_rows, _round_up(_cdiv(rows, 2), 8))
        num_blocks = _cdiv(rows, block_rows)

    apply_mask = (pad > 0) or (rows % block_rows != 0)
    out_rows = 8 if block_rows % 8 == 0 else block_rows

    kernel = functools.partial(
        _focal_loss_kernel,
        block_rows=block_rows, lanes=_LANE, out_rows=out_rows,
        full_rows=full_rows, tail_cols=tail_cols,
        apply_mask=apply_mask, binary_targets=binary_targets)

    partials = pl.pallas_call(
        kernel,
        out_shape=jax.ShapeDtypeStruct((num_blocks * out_rows, _LANE), jnp.float32),
        grid_spec=pltpu.PrefetchScalarGridSpec(
            num_scalar_prefetch=0,
            grid=(num_blocks,),
            in_specs=[
                pl.BlockSpec((block_rows, _LANE), lambda i: (i, 0)),
                pl.BlockSpec((block_rows, _LANE), lambda i: (i, 0)),
            ],
            out_specs=pl.BlockSpec((out_rows, _LANE), lambda i: (i, 0)),
        ),
        compiler_params=pltpu.CompilerParams(
            # Each block writes its own output rows -> safe to shard across TCs.
            dimension_semantics=("parallel",),
            vmem_limit_bytes=48 << 20,
        ),
    )(x2, t2)

    # Cross-lane/sublane reduction + divide happen once, here.
    return jnp.sum(partials) / jnp.float32(denom)


def focal_loss_ref(x, target, gamma=GAMMA):
    """Pure-JAX reference mirroring the PyTorch forward exactly."""
    x = x.astype(jnp.float32)
    t = target.astype(jnp.float32)
    max_val = jnp.maximum(-x, 0.0)
    loss = x - x * t + max_val + jnp.log(jnp.exp(-max_val) + jnp.exp(-x - max_val))
    invprobs = jax.nn.log_sigmoid(-x * (t * 2.0 - 1.0))
    loss = jnp.exp(invprobs * gamma) * loss
    if loss.ndim == 2:
        loss = loss.sum(axis=1)
    return loss.mean()


if __name__ == "__main__":
    key = jax.random.PRNGKey(0)
    k1, k2, k3, k4, k5, k6 = jax.random.split(key, 6)

    # 1) 2-D case, hard targets kept narrow (bf16 0/1), binary fast path.
    N, C = 8, 32
    x2d = jax.random.normal(k1, (N, C), dtype=jnp.float32) * 2.0
    t2d = (jax.random.uniform(k2, (N, C)) > 0.5).astype(jnp.bfloat16)
    out2d = jax.block_until_ready(focal_loss(x2d, t2d, binary_targets=True))
    ref2d = focal_loss_ref(x2d, t2d)
    assert jnp.allclose(out2d, ref2d, rtol=1e-5, atol=1e-5), (out2d, ref2d)

    # 2) non-2-D case (plain mean), float {0,1} targets -> soft path + tail mask.
    x3d = jax.random.normal(k3, (4, 5, 7), dtype=jnp.float32)
    t3d = (jax.random.uniform(k4, (4, 5, 7)) > 0.5).astype(jnp.float32)
    out3d = jax.block_until_ready(focal_loss(x3d, t3d))
    ref3d = focal_loss_ref(x3d, t3d)
    assert jnp.allclose(out3d, ref3d, rtol=1e-5, atol=1e-5), (out3d, ref3d)

    # 3) 2-D case with genuinely soft targets (general path, ragged tail).
    xs = jax.random.normal(k5, (3, 40), dtype=jnp.float32)
    ts = jax.random.uniform(k6, (3, 40), dtype=jnp.float32)
    outs = jax.block_until_ready(focal_loss(xs, ts))
    refs = focal_loss_ref(xs, ts)
    assert jnp.allclose(outs, refs, rtol=1e-5, atol=1e-5), (outs, refs)

    print("KERNEL_OK")
</pallas_src>

<mosaic_0001>
module attributes {stable_mosaic.version = 11 : i64} {
  func.func @_focal_loss_kernel(%arg0: i32, %arg1: memref<2x128xf32, #tpu.memory_space<vmem>>, %arg2: memref<2x128xbf16, #tpu.memory_space<vmem>>, %arg3: memref<2x128xf32, #tpu.memory_space<vmem>>) attributes {dimension_semantics = [#tpu.dimension_semantics<parallel>], iteration_bounds = array<i64: 1>, scalar_prefetch = 0 : i64, scratch_operands = 0 : i64, tpu.core_type = #tpu.core_type<tc>, window_params = [{transform_indices = @transform_0, window_bounds = array<i64: 2, 128>}, {transform_indices = @transform_1, window_bounds = array<i64: 2, 128>}, {transform_indices = @transform_2, window_bounds = array<i64: 2, 128>}]} {
    %c0 = arith.constant 0 : index
    %c0_0 = arith.constant 0 : index
    %0 = vector.load %arg1[%c0, %c0_0] : memref<2x128xf32, #tpu.memory_space<vmem>>, vector<2x128xf32>
    %c0_1 = arith.constant 0 : index
    %c0_2 = arith.constant 0 : index
    %1 = vector.load %arg2[%c0_1, %c0_2] : memref<2x128xbf16, #tpu.memory_space<vmem>>, vector<2x128xbf16>
    %2 = arith.extf %1 : vector<2x128xbf16> to vector<2x128xf32>
    %3 = math.absf %0 : vector<2x128xf32>
    %cst = arith.constant 0.000000e+00 : f32
    %4 = vector.broadcast %cst : f32 to vector<2x128xf32>
    %5 = arith.subf %4, %3 : vector<2x128xf32>
    %6 = math.exp %5 : vector<2x128xf32>
    %7 = math.log1p %6 : vector<2x128xf32>
    %cst_3 = arith.constant 1.000000e+00 : f32
    %8 = vector.broadcast %cst_3 : f32 to vector<2x128xf32>
    %9 = arith.subf %8, %2 : vector<2x128xf32>
    %10 = arith.mulf %0, %9 : vector<2x128xf32>
    %cst_4 = arith.constant 0.000000e+00 : f32
    %11 = vector.broadcast %cst_4 : f32 to vector<2x128xf32>
    %12 = arith.subf %11, %0 : vector<2x128xf32>
    %cst_5 = arith.constant 0.000000e+00 : f32
    %13 = vector.broadcast %cst_5 : f32 to vector<2x128xf32>
    %14 = arith.maximumf %12, %13 : vector<2x128xf32>
    %15 = arith.addf %10, %14 : vector<2x128xf32>
    %16 = arith.addf %15, %7 : vector<2x128xf32>
    %cst_6 = arith.constant 2.000000e+00 : f32
    %17 = vector.broadcast %cst_6 : f32 to vector<2x128xf32>
    %18 = arith.mulf %2, %17 : vector<2x128xf32>
    %cst_7 = arith.constant 1.000000e+00 : f32
    %19 = vector.broadcast %cst_7 : f32 to vector<2x128xf32>
    %20 = arith.subf %18, %19 : vector<2x128xf32>
    %21 = arith.mulf %0, %20 : vector<2x128xf32>
    %cst_8 = arith.constant 0.000000e+00 : f32
    %22 = vector.broadcast %cst_8 : f32 to vector<2x128xf32>
    %23 = arith.maximumf %21, %22 : vector<2x128xf32>
    %24 = arith.addf %23, %7 : vector<2x128xf32>
    %cst_9 = arith.constant -2.000000e+00 : f32
    %25 = vector.broadcast %cst_9 : f32 to vector<2x128xf32>
    %26 = arith.mulf %25, %24 : vector<2x128xf32>
    %27 = math.exp %26 : vector<2x128xf32>
    %28 = arith.mulf %27, %16 : vector<2x128xf32>
    %c0_10 = arith.constant 0 : index
    %c0_11 = arith.constant 0 : index
    %29 = vector.load %arg3[%c0_10, %c0_11] : memref<2x128xf32, #tpu.memory_space<vmem>>, vector<2x128xf32>
    tpu.vector_store %arg3[%c0_10, %c0_11], %28 {strides = array<i32>} : memref<2x128xf32, #tpu.memory_space<vmem>>, vector<2x128xf32>,
    return
  }
  func.func @transform_0(%arg0: i32) -> (i32, i32) {
    %c0_i32 = arith.constant 0 : i32
    %c0_i32_0 = arith.constant 0 : i32
    return %arg0, %c0_i32 : i32, i32
  }
  func.func @transform_1(%arg0: i32) -> (i32, i32) {
    %c0_i32 = arith.constant 0 : i32
    %c0_i32_0 = arith.constant 0 : i32
    return %arg0, %c0_i32 : i32, i32
  }
  func.func @transform_2(%arg0: i32) -> (i32, i32) {
    %c0_i32 = arith.constant 0 : i32
    %c0_i32_0 = arith.constant 0 : i32
    return %arg0, %c0_i32 : i32, i32
  }
}

</mosaic_0001>

<llo_original>
// kernel: focal_loss.1
$region0: #{focal_loss.1}
  #allocation0 [shape = 'u32[]', space=smem, size = 0x4, offset = 0x4, fixed_abs, tag = 'smem constant byte address 0x4 - core index']
  #allocation1 [shape = 'u32[144,128]{1,0:T(1,128)}', space=vmem, size = 0x12000, scoped, tag = 'internal scratch']
  %s0 = inlined_call_operand.vmem [shape: f32[2,128], index: 0, kind: input, shape index: {}]
  %s1 = inlined_call_operand.vmem [shape: bf16[2,128], index: 1, kind: input, shape index: {}]
  %s2 = inlined_call_operand.vmem [shape: f32[2,128], index: 2, kind: output, shape index: {}]
  %s3 = sld [smem:[#allocation0]]
  $region18: #{focal_loss.1} parent=0
    _
  %s5 = ssub.s32 1, %s3
  %s6 = scalar_select 0, %s5, %s3
  // Predicated region
  $region2: #{focal_loss.1} parent=0 // pred_check
    _
  $region3: #{focal_loss.1} parent=0 // pred_check_branch
    %8 = sbr.rel (0) target = $region5
  $region4: #{focal_loss.1} parent=0 // pred_region
    _
  $region5: #{focal_loss.1} parent=0 // pred_fallthru
    _
  // Predicated region
  $region6: #{focal_loss.1} parent=0 // pred_check
    _
  $region7: #{focal_loss.1} parent=0 // pred_check_branch
    %10 = sbr.rel (0) target = $region9
  $region8: #{focal_loss.1} parent=0 // pred_region
    _
  $region9: #{focal_loss.1} parent=0 // pred_fallthru
    _
  %v11 = vld [vmem:[%s0] sm:$0x3]
  %v12 = vld [vmem:[%s1] sm:$0x1]
  %v13 = vunpack.c.l.bf16 %v12
  %v14 = vand.u32 2147483647, %v11
  %v15 = vsub.f32 0.0, %v14
  %v16 = vmul.f32 %v15, 1.442695
  %v17 = vpow.pop %v16
  %v18 = vadd.f32 %v17, 1.0
  %v19 = vlog2.pop %v18
  %v20 = vmul.f32 %v19, 0.6931472
  %v21 = vmul.f32 -0.5, %v17
  %v22 = vadd.f32 %v21, 1.0
  %v23 = vmul.f32 %v22, %v17
  %v24 = vand.u32 2147483647, %v17
  %vm25 = vcmp.lt.f32.partialorder %v24, 0.0004427343
  %v26 = vsel %vm25, %v23, %v20
  %v27 = vsub.f32 1.0, %v13
  %v28 = vmul.f32 %v11, %v27
  %v29 = vsub.f32 0.0, %v11
  %v30 = vmax.f32 %v29, 0.0
  %v31 = vadd.f32 %v28, %v30
  %v32 = vadd.f32 %v31, %v26
  %v33 = vmul.f32 %v13, 2.0
  %v34 = vsub.f32 %v33, 1.0
  %v35 = vmul.f32 %v11, %v34
  %v36 = vmax.f32 %v35, 0.0
  %v37 = vadd.f32 %v36, %v26
  %v38 = vmul.f32 %v37, -2.0
  %v39 = vmul.f32 %v38, 1.442695
  %v40 = vpow.pop %v39
  %v41 = vmul.f32 %v40, %v32
  %42 = vst [vmem:[%s2] sm:$0x3] %v41
  // Predicated region
  $region10: #{focal_loss.1} parent=0 // pred_check
    _
  $region11: #{focal_loss.1} parent=0 // pred_check_branch
    %44 = sbr.rel (0) target = $region13
  $region12: #{focal_loss.1} parent=0 // pred_region
    _
  $region13: #{focal_loss.1} parent=0 // pred_fallthru
    _
  // Predicated region
  $region14: #{focal_loss.1} parent=0 // pred_check
    _
  $region15: #{focal_loss.1} parent=0 // pred_check_branch
    %46 = sbr.rel (0) target = $region17
  $region16: #{focal_loss.1} parent=0 // pred_region
    _
  $region17: #{focal_loss.1} parent=0 // pred_fallthru
    _

</llo_original>
